<compile_context>
chip_gen: v6e
topology: v6e:2x2x1
jax: 0.10.0
libtpu: 0.0.40
codegen_flags: <defaults>
</compile_context>

<pallas_src>
import functools
import math

import jax
import jax.numpy as jnp
from jax.experimental import pallas as pl
from jax.experimental.pallas import tpu as pltpu


def _round_up(x, m):
    return ((x + m - 1) // m) * m


def _cdiv(a, b):
    return -(-a // b)


def _focal_terms(x, t, alpha, gamma, epsilon):
    """Element-wise focal-loss terms in f32 (same formula as the PyTorch module)."""
    x = x.astype(jnp.float32)
    t = t.astype(jnp.float32)
    p = 1.0 / (1.0 + jnp.exp(-x))            # sigmoid: exp + divide (EUP)
    omp = 1.0 - p
    if gamma == 2.0:                          # static fast path for default gamma
        pow_omp = omp * omp
        pow_p = p * p
    else:
        pow_omp = jnp.power(omp, gamma)
        pow_p = jnp.power(p, gamma)
    return ((-alpha) * t * pow_omp * jnp.log(p + epsilon)
            - (1.0 - alpha) * (1.0 - t) * pow_p * jnp.log(omp + epsilon))


def _tensorcores_per_chip():
    """Best-effort detection of TensorCores per chip (2 on v7x, else 1)."""
    try:
        info = pltpu.get_tpu_info()
        for name in ("num_tensorcores", "tensorcore_count", "num_cores",
                     "core_count"):
            v = getattr(info, name, None)
            if v:
                return max(1, min(2, int(v)))
    except Exception:
        pass
    try:
        kind = jax.devices()[0].device_kind.lower()
        if "v7" in kind:
            return 2
    except Exception:
        pass
    return 1


def _focal_loss_kernel(pred_ref, true_ref, out_ref, acc_ref, *,
                       alpha, gamma, epsilon, rows, block_rows,
                       steps_per_core, may_be_partial, fold):
    c = pl.program_id(0)          # core-split axis ("parallel")
    k = pl.program_id(1)          # streaming / reduction axis ("arbitrary")

    @pl.when(k == 0)
    def _():
        acc_ref[...] = jnp.zeros_like(acc_ref)

    loss = _focal_terms(pred_ref[...], true_ref[...], alpha, gamma, epsilon)

    def fold_rows(v):
        # Fold the block's rows down to the (8, COLS) accumulator with VALU
        # adds only; the single cross-lane XLU reduce happens on the last step.
        if fold:
            return v.reshape(-1, 8, v.shape[-1]).sum(axis=0)
        return v

    if may_be_partial:
        # Only the block(s) straddling / past the last valid row pay the
        # iota + select cost; interior blocks take the unmasked path.
        row0 = (c * steps_per_core + k) * block_rows
        partial = row0 + block_rows > rows

        @pl.when(partial)
        def _():
            rid = jax.lax.broadcasted_iota(jnp.int32, loss.shape, 0) + row0
            acc_ref[...] += fold_rows(jnp.where(rid < rows, loss, 0.0))

        @pl.when(jnp.logical_not(partial))
        def _():
            acc_ref[...] += fold_rows(loss)
    else:
        acc_ref[...] += fold_rows(loss)

    @pl.when(k == pl.num_programs(1) - 1)
    def _():
        out_ref[...] = jnp.zeros_like(out_ref) + jnp.sum(acc_ref[...])


def binary_focal_loss_pallas(y_pred, y_true, alpha=0.25, gamma=2.0,
                             epsilon=1e-7):
    assert y_pred.shape == y_true.shape
    total = int(math.prod(y_pred.shape))
    assert total > 0

    pred = y_pred.reshape(-1)                 # pure reshape, no copy
    true = y_true
    if true.dtype == jnp.bool_:
        true = true.astype(jnp.int8)          # keep targets narrow (1 B/elem)
    true = true.reshape(-1)

    # Lane-dense width: prefer a 128-multiple that divides the element count so
    # no host-side pad/copy is ever needed; otherwise the < COLS remainder is
    # handled in plain JAX below.
    cols = 512
    for cand in (2048, 1024, 512, 256, 128):
        if total % cand == 0:
            cols = cand
            break

    rows = total // cols
    main = rows * cols
    rem = total - main

    alpha_f, gamma_f, eps_f = float(alpha), float(gamma), float(epsilon)

    if rem:
        tail_sum = jnp.sum(_focal_terms(pred[main:], true[main:],
                                        alpha_f, gamma_f, eps_f))
    else:
        tail_sum = jnp.zeros((), jnp.float32)

    if rows == 0:                             # tiny input: no kernel needed
        return tail_sum / total

    pred2 = (pred[:main] if rem else pred).reshape(rows, cols)
    true2 = (true[:main] if rem else true).reshape(rows, cols)

    ncores = _tensorcores_per_chip()

    # ~2 MiB of f32 y_pred per block: big enough to amortize the ~0.35 us
    # per-grid-step overhead, small enough that double-buffered inputs plus the
    # compiler's elementwise temporaries stay well under the 32 MiB VMEM limit
    # on every generation (v5e / v6e / v7x).
    target_rows = max(32, (2 << 20) // (4 * cols))     # multiple of 32
    block_rows = min(target_rows, rows)
    if ncores > 1 and rows > 32:
        # keep both TensorCores busy for medium-sized inputs (v7x)
        block_rows = min(block_rows, _round_up(_cdiv(rows, ncores), 32))
    block_rows = max(1, min(block_rows, rows))

    nblocks = _cdiv(rows, block_rows)
    steps_per_core = _cdiv(nblocks, ncores)
    may_be_partial = (rows % block_rows != 0) or (nblocks % ncores != 0)
    fold = (block_rows > 8) and (block_rows % 8 == 0)
    acc_rows = 8 if fold else block_rows

    kernel = functools.partial(
        _focal_loss_kernel,
        alpha=alpha_f, gamma=gamma_f, epsilon=eps_f,
        rows=rows, block_rows=block_rows, steps_per_core=steps_per_core,
        may_be_partial=may_be_partial, fold=fold)

    def in_idx(c, k):
        blk = c * steps_per_core + k
        return (jnp.minimum(blk, nblocks - 1), 0)   # clamp trailing OOB blocks

    partials = pl.pallas_call(
        kernel,
        out_shape=jax.ShapeDtypeStruct((ncores, 1, 1), jnp.float32),
        grid_spec=pltpu.PrefetchScalarGridSpec(
            num_scalar_prefetch=0,
            grid=(ncores, steps_per_core),
            in_specs=[
                pl.BlockSpec((block_rows, cols), in_idx),
                pl.BlockSpec((block_rows, cols), in_idx),
            ],
            out_specs=pl.BlockSpec((1, 1, 1), lambda c, k: (c, 0, 0)),
            scratch_shapes=[pltpu.VMEM((acc_rows, cols), jnp.float32)],
        ),
        compiler_params=pltpu.CompilerParams(
            dimension_semantics=("parallel", "arbitrary"),
            vmem_limit_bytes=32 * 1024 * 1024),
    )(pred2, true2)

    return (jnp.sum(partials) + tail_sum) / total


def binary_focal_loss_reference(y_pred, y_true, alpha=0.25, gamma=2.0,
                                epsilon=1e-7):
    p = jax.nn.sigmoid(y_pred.astype(jnp.float32))
    t = y_true.astype(jnp.float32)
    loss = (-alpha * t * jnp.power(1.0 - p, gamma) * jnp.log(p + epsilon)
            - (1.0 - alpha) * (1.0 - t) * jnp.power(p, gamma)
            * jnp.log(1.0 - p + epsilon))
    return jnp.mean(loss)


if __name__ == "__main__":
    key = jax.random.PRNGKey(0)
    k1, k2 = jax.random.split(key)

    N, C, H, W = 2, 4, 16, 16
    y_pred = jax.random.normal(k1, (N, C, H, W), dtype=jnp.float32)
    y_true = jax.random.bernoulli(k2, 0.4, (N, C, H, W))   # bool targets

    out = binary_focal_loss_pallas(y_pred, y_true)
    out = jax.block_until_ready(out)

    ref = binary_focal_loss_reference(y_pred, y_true)
    assert jnp.allclose(out, ref, atol=1e-5, rtol=1e-4), (out, ref)

    print("KERNEL_OK")
</pallas_src>

<mosaic_0001>
module attributes {stable_mosaic.version = 11 : i64} {
  func.func @_focal_loss_kernel(%arg0: i32, %arg1: i32, %arg2: memref<1x2048xf32, #tpu.memory_space<vmem>>, %arg3: memref<1x2048xi8, #tpu.memory_space<vmem>>, %arg4: memref<1x1x1xf32, #tpu.memory_space<vmem>>, %arg5: memref<1x2048xf32, #tpu.memory_space<vmem>>) attributes {dimension_semantics = [#tpu.dimension_semantics<parallel>, #tpu.dimension_semantics<arbitrary>], iteration_bounds = array<i64: 1, 1>, scalar_prefetch = 0 : i64, scratch_operands = 1 : i64, tpu.core_type = #tpu.core_type<tc>, window_params = [{transform_indices = @transform_0, window_bounds = array<i64: 1, 2048>}, {transform_indices = @transform_1, window_bounds = array<i64: 1, 2048>}, {transform_indices = @transform_2, window_bounds = array<i64: 1, 1, 1>}]} {
    %c0_i32 = arith.constant 0 : i32
    %0 = arith.cmpi eq, %arg1, %c0_i32 : i32
    %1 = arith.extui %0 : i1 to i32
    %c0_i32_0 = arith.constant 0 : i32
    %2 = arith.cmpi ne, %1, %c0_i32_0 : i32
    scf.if %2 {
      %cst_18 = arith.constant 0.000000e+00 : f32
      %40 = vector.broadcast %cst_18 : f32 to vector<1x2048xf32>
      %c0_19 = arith.constant 0 : index
      %c0_20 = arith.constant 0 : index
      %41 = vector.load %arg5[%c0_19, %c0_20] : memref<1x2048xf32, #tpu.memory_space<vmem>>, vector<1x2048xf32>
      tpu.vector_store %arg5[%c0_19, %c0_20], %40 {strides = array<i32>} : memref<1x2048xf32, #tpu.memory_space<vmem>>, vector<1x2048xf32>,
    } else {
    }
    %c0 = arith.constant 0 : index
    %c0_1 = arith.constant 0 : index
    %3 = vector.load %arg2[%c0, %c0_1] : memref<1x2048xf32, #tpu.memory_space<vmem>>, vector<1x2048xf32>
    %c0_2 = arith.constant 0 : index
    %c0_3 = arith.constant 0 : index
    %4 = vector.load %arg3[%c0_2, %c0_3] : memref<1x2048xi8, #tpu.memory_space<vmem>>, vector<1x2048xi8>
    %5 = arith.sitofp %4 : vector<1x2048xi8> to vector<1x2048xf32>
    %cst = arith.constant 0.000000e+00 : f32
    %6 = vector.broadcast %cst : f32 to vector<1x2048xf32>
    %7 = arith.subf %6, %3 : vector<1x2048xf32>
    %8 = math.exp %7 : vector<1x2048xf32>
    %cst_4 = arith.constant 1.000000e+00 : f32
    %9 = vector.broadcast %cst_4 : f32 to vector<1x2048xf32>
    %10 = arith.addf %9, %8 : vector<1x2048xf32>
    %cst_5 = arith.constant 1.000000e+00 : f32
    %11 = vector.broadcast %cst_5 : f32 to vector<1x2048xf32>
    %12 = arith.divf %11, %10 : vector<1x2048xf32>
    %cst_6 = arith.constant 1.000000e+00 : f32
    %13 = vector.broadcast %cst_6 : f32 to vector<1x2048xf32>
    %14 = arith.subf %13, %12 : vector<1x2048xf32>
    %15 = arith.mulf %14, %14 : vector<1x2048xf32>
    %16 = arith.mulf %12, %12 : vector<1x2048xf32>
    %cst_7 = arith.constant -2.500000e-01 : f32
    %17 = vector.broadcast %cst_7 : f32 to vector<1x2048xf32>
    %18 = arith.mulf %17, %5 : vector<1x2048xf32>
    %19 = arith.mulf %18, %15 : vector<1x2048xf32>
    %cst_8 = arith.constant 1.000000e-07 : f32
    %20 = vector.broadcast %cst_8 : f32 to vector<1x2048xf32>
    %21 = arith.addf %12, %20 : vector<1x2048xf32>
    %22 = math.log %21 : vector<1x2048xf32>
    %23 = arith.mulf %19, %22 : vector<1x2048xf32>
    %cst_9 = arith.constant 1.000000e+00 : f32
    %24 = vector.broadcast %cst_9 : f32 to vector<1x2048xf32>
    %25 = arith.subf %24, %5 : vector<1x2048xf32>
    %cst_10 = arith.constant 7.500000e-01 : f32
    %26 = vector.broadcast %cst_10 : f32 to vector<1x2048xf32>
    %27 = arith.mulf %26, %25 : vector<1x2048xf32>
    %28 = arith.mulf %27, %16 : vector<1x2048xf32>
    %cst_11 = arith.constant 1.000000e-07 : f32
    %29 = vector.broadcast %cst_11 : f32 to vector<1x2048xf32>
    %30 = arith.addf %14, %29 : vector<1x2048xf32>
    %31 = math.log %30 : vector<1x2048xf32>
    %32 = arith.mulf %28, %31 : vector<1x2048xf32>
    %33 = arith.subf %23, %32 : vector<1x2048xf32>
    %c0_12 = arith.constant 0 : index
    %c0_13 = arith.constant 0 : index
    %34 = vector.load %arg5[%c0_12, %c0_13] : memref<1x2048xf32, #tpu.memory_space<vmem>>, vector<1x2048xf32>
    %35 = arith.addf %34, %33 : vector<1x2048xf32>
    %c0_14 = arith.constant 0 : index
    %c0_15 = arith.constant 0 : index
    %36 = vector.load %arg5[%c0_14, %c0_15] : memref<1x2048xf32, #tpu.memory_space<vmem>>, vector<1x2048xf32>
    tpu.vector_store %arg5[%c0_14, %c0_15], %35 {strides = array<i32>} : memref<1x2048xf32, #tpu.memory_space<vmem>>, vector<1x2048xf32>,
    %c0_i32_16 = arith.constant 0 : i32
    %37 = arith.cmpi eq, %arg1, %c0_i32_16 : i32
    %38 = arith.extui %37 : i1 to i32
    %c0_i32_17 = arith.constant 0 : i32
    %39 = arith.cmpi ne, %38, %c0_i32_17 : i32
    scf.if %39 {
      %cst_18 = arith.constant 0.000000e+00 : f32
      %40 = vector.broadcast %cst_18 : f32 to vector<1x1x1xf32>
      %c0_19 = arith.constant 0 : index
      %c0_20 = arith.constant 0 : index
      %41 = vector.load %arg5[%c0_19, %c0_20] : memref<1x2048xf32, #tpu.memory_space<vmem>>, vector<1x2048xf32>
      %42 = vector.shape_cast %41 : vector<1x2048xf32> to vector<1x1x2048xf32>
      %cst_21 = arith.constant dense<0.000000e+00> : vector<1xf32>
      %43 = vector.multi_reduction <add>, %42, %cst_21 [1, 2] : vector<1x1x2048xf32> to vector<1xf32>
      %44 = vector.shape_cast %43 : vector<1xf32> to vector<1x1x1xf32>
      %45 = vector.extract %44[0, 0, 0] : f32 from vector<1x1x1xf32>
      %46 = vector.broadcast %45 : f32 to vector<1x1x1xf32>
      %47 = arith.addf %40, %46 : vector<1x1x1xf32>
      %c0_22 = arith.constant 0 : index
      %c0_23 = arith.constant 0 : index
      %c0_24 = arith.constant 0 : index
      %48 = vector.load %arg4[%c0_22, %c0_23, %c0_24] : memref<1x1x1xf32, #tpu.memory_space<vmem>>, vector<1x1x1xf32>
      tpu.vector_store %arg4[%c0_22, %c0_23, %c0_24], %47 {strides = array<i32>} : memref<1x1x1xf32, #tpu.memory_space<vmem>>, vector<1x1x1xf32>,
    } else {
    }
    return
  }
  func.func @transform_0(%arg0: i32, %arg1: i32) -> (i32, i32) {
    %c1_i32 = arith.constant 1 : i32
    %0 = arith.muli %arg0, %c1_i32 : i32
    %1 = arith.addi %0, %arg1 : i32
    %c0_i32 = arith.constant 0 : i32
    %2 = arith.minsi %1, %c0_i32 : i32
    %c0_i32_0 = arith.constant 0 : i32
    %c0_i32_1 = arith.constant 0 : i32
    return %2, %c0_i32_0 : i32, i32
  }
  func.func @transform_1(%arg0: i32, %arg1: i32) -> (i32, i32) {
    %c1_i32 = arith.constant 1 : i32
    %0 = arith.muli %arg0, %c1_i32 : i32
    %1 = arith.addi %0, %arg1 : i32
    %c0_i32 = arith.constant 0 : i32
    %2 = arith.minsi %1, %c0_i32 : i32
    %c0_i32_0 = arith.constant 0 : i32
    %c0_i32_1 = arith.constant 0 : i32
    return %2, %c0_i32_0 : i32, i32
  }
  func.func @transform_2(%arg0: i32, %arg1: i32) -> (i32, i32, i32) {
    %c0_i32 = arith.constant 0 : i32
    %c0_i32_0 = arith.constant 0 : i32
    %c0_i32_1 = arith.constant 0 : i32
    return %arg0, %c0_i32, %c0_i32_0 : i32, i32, i32
  }
}

</mosaic_0001>

<llo_original>
// kernel: tpu_custom_call.1
$region0: #{tpu_custom_call.1}
  #allocation0 [shape = 'u32[]', space=smem, size = 0x4, offset = 0x4, fixed_abs, tag = 'smem constant byte address 0x4 - core index']
  #allocation1 [shape = 'u32[144,128]{1,0:T(1,128)}', space=vmem, size = 0x12000, scoped, tag = 'internal scratch']
  #allocation2 [shape = 'f32[1,2048]{1,0:T(1,128)}', space=vmem, size = 0x2000, scoped, tag = 'scratch operand']
  %s0 = inlined_call_operand.hbm [shape: f32[1,2048], index: 0, kind: input, shape index: {}]
  %s1 = inlined_call_operand.hbm [shape: s8[1,2048], index: 1, kind: input, shape index: {}]
  %s2 = inlined_call_operand.hbm [shape: f32[1,1,1], index: 2, kind: output, shape index: {}]
  %s3 = sld [smem:[#allocation0]]
  $region34: #{tpu_custom_call.1} parent=0
    _
  %s5 = ssub.s32 1, %s3
  %s6 = scalar_select 0, %s5, %s3
  $region1: #{tpu_custom_call.1} parent=0
    #allocation3 [shape = 'u8[8192]{0}', space=vmem, size = 0x2000, scoped, tag = 'input window, operand 0, single buffered']
    #allocation4 [shape = 's32[1]{0}', space=sflag, size = 0x4, scoped, tag = 'scoped memory for tpu_custom_call.1']
    #allocation5 [shape = 's32[1]{0}', space=sflag, size = 0x4, scoped, tag = 'scoped memory for tpu_custom_call.1']
    #allocation6 [shape = 'u8[8192]{0}', space=vmem, size = 0x2000, scoped, tag = 'input window, operand 1, single buffered']
    #allocation7 [shape = 's32[1]{0}', space=sflag, size = 0x4, scoped, tag = 'scoped memory for tpu_custom_call.1']
    #allocation8 [shape = 'u8[512]{0}', space=vmem, size = 0x400, scoped, tag = 'output window, operand 0, single buffered']
    %7 = vsyncpa [#allocation4], 0
    %8 = vsyncpa [#allocation7], 0
    %9 = vsyncpa [#allocation5], 0
    // Predicated region
    $region2: #{tpu_custom_call.1} parent=1 // pred_check
      _
    $region3: #{tpu_custom_call.1} parent=1 // pred_check_branch
      %11 = sbr.rel (0) target = $region5
    $region4: #{tpu_custom_call.1} parent=1 // pred_region
      %s12 = sadd.s32 0, 0
      %p13 = scmp.lt.s32.totalorder %s12, 0
      %s14 = scalar_select %p13, %s12, 0
      %s16 = ssub.s32 256, 256
      %17 = vsyncadd [#allocation4], %s16
      %s18 = smul.addr %s14, 16
      %s19 = smul.addr %s18, 16
      %s20 = scalar_lea.hbm %s0, %s19
      %s22 = sshll.u32 [#allocation3], 4
      %s23 = int_to_ptr.vmem [resolvable:$true] %s22
      %25 = dma.hbm_to_vmem [thread:$0]  %s20, 256, %s23, [#allocation4]
    $region5: #{tpu_custom_call.1} parent=1 // pred_fallthru
      _
    // Predicated region
    $region6: #{tpu_custom_call.1} parent=1 // pred_check
      _
    $region7: #{tpu_custom_call.1} parent=1 // pred_check_branch
      %27 = sbr.rel (0) target = $region9
    $region8: #{tpu_custom_call.1} parent=1 // pred_region
      %s28 = sadd.s32 0, 0
      %p29 = scmp.lt.s32.totalorder %s28, 0
      %s30 = scalar_select %p29, %s28, 0
      %s32 = ssub.s32 256, 256
      %33 = vsyncadd [#allocation7], %s32
      %s34 = smul.addr %s30, 16
      %s35 = smul.addr %s34, 16
      %s36 = scalar_lea.hbm %s1, %s35
      %s38 = sshll.u32 [#allocation6], 4
      %s39 = int_to_ptr.vmem [resolvable:$true] %s38
      %41 = dma.hbm_to_vmem [thread:$0]  %s36, 256, %s39, [#allocation7]
    $region9: #{tpu_custom_call.1} parent=1 // pred_fallthru
      _
    // Predicated region
    $region10: #{tpu_custom_call.1} parent=1 // pred_check
      _
    $region11: #{tpu_custom_call.1} parent=1 // pred_check_branch
      %43 = sbr.rel (0) target = $region13
    $region12: #{tpu_custom_call.1} parent=1 // pred_region
      %44 = dma.done [#allocation4], 256
    $region13: #{tpu_custom_call.1} parent=1 // pred_fallthru
      _
    // Predicated region
    $region14: #{tpu_custom_call.1} parent=1 // pred_check
      _
    $region15: #{tpu_custom_call.1} parent=1 // pred_check_branch
      %46 = sbr.rel (0) target = $region17
    $region16: #{tpu_custom_call.1} parent=1 // pred_region
      %47 = dma.done [#allocation7], 256
    $region17: #{tpu_custom_call.1} parent=1 // pred_fallthru
      _
    %s48 = sadd.s32 0, 0
    %p49 = scmp.lt.s32.totalorder %s48, 0
    %s50 = scalar_select %p49, %s48, 0
    %s51 = sadd.s32 0, 0
    %p52 = scmp.lt.s32.totalorder %s51, 0
    %s53 = scalar_select %p52, %s51, 0
    %p54 = scmp.eq.s32.totalorder 0, 0
    // Predicated region
    $region18: #{tpu_custom_call.1} parent=1 // pred_check
      %p55 = pneg %p54
    $region19: #{tpu_custom_call.1} parent=1 // pred_check_branch
      %57 = sbr.rel (%p55) target = $region21
    $region20: #{tpu_custom_call.1} parent=1 // pred_region
      %58 = vst [vmem:[#allocation2] sm:$0xff] 0.0
      %59 = vst [vmem:[#allocation2 + $0x8] sm:$0xff] 0.0
    $region21: #{tpu_custom_call.1} parent=1 // pred_fallthru
      _
    %v60 = vld [vmem:[#allocation3] sm:$0xff]
    %v61 = vld [vmem:[#allocation3 + $0x8] sm:$0xff]
    %v62 = vld [vmem:[#allocation6] sm:$0xff]
    %v63 = vld [vmem:[#allocation6 + $0x8] sm:$0xff]
    %v64 = vunpack.c.0.s8 %v62
    %v65 = vunpack.c.1.s8 %v62
    %v66 = vunpack.c.2.s8 %v62
    %v67 = vunpack.c.3.s8 %v62
    %v68 = vunpack.c.0.s8 %v63
    %v69 = vunpack.c.1.s8 %v63
    %v70 = vunpack.c.2.s8 %v63
    %v71 = vunpack.c.3.s8 %v63
    %v72 = vcvt.s32.f32 %v64
    %v73 = vcvt.s32.f32 %v65
    %v74 = vcvt.s32.f32 %v66
    %v75 = vcvt.s32.f32 %v67
    %v76 = vcvt.s32.f32 %v68
    %v77 = vcvt.s32.f32 %v69
    %v78 = vcvt.s32.f32 %v70
    %v79 = vcvt.s32.f32 %v71
    %v80 = vsub.f32 0.0, %v60
    %v81 = vsub.f32 0.0, %v61
    %v82 = vmul.f32 %v80, 1.442695
    %v83 = vpow.pop %v82
    %v84 = vmul.f32 %v81, 1.442695
    %v85 = vpow.pop %v84
    %v86 = vadd.f32 %v83, 1.0
    %v87 = vadd.f32 %v85, 1.0
    %v88 = vrcp.pop %v86
    %v89 = vmul.f32 1.0, %v88
    %v90 = vrcp.pop %v87
    %v91 = vmul.f32 1.0, %v90
    %v92 = vsub.f32 1.0, %v89
    %v93 = vsub.f32 1.0, %v91
    %v94 = vmul.f32 %v92, %v92
    %v95 = vmul.f32 %v93, %v93
    %v96 = vmul.f32 %v89, %v89
    %v97 = vmul.f32 %v91, %v91
    %v98 = vmul.f32 %v72, -0.25
    %v99 = vmul.f32 %v73, -0.25
    %v100 = vmul.f32 %v74, -0.25
    %v101 = vmul.f32 %v75, -0.25
    %v102 = vmul.f32 %v76, -0.25
    %v103 = vmul.f32 %v77, -0.25
    %v104 = vmul.f32 %v78, -0.25
    %v105 = vmul.f32 %v79, -0.25
    %v109 = vunpack.c.l.s4 286326784
    %v110 = vunpack.c.0.s8 %v109
    %v111 = vlaneseq
    %v112 = vshrl.u32 %v111, 7
    %v113 = vsub.s32 %v110, %v112
    %v114 = vrot.slane %v94, %v113
    %v116 = vunpack.c.l.s4 858989090
    %v117 = vunpack.c.0.s8 %v116
    %v118 = vlaneseq
    %v119 = vshrl.u32 %v118, 7
    %v120 = vsub.s32 %v117, %v119
    %v121 = vrot.slane %v94, %v120
    %v123 = vunpack.c.l.s4 1431651396
    %v124 = vunpack.c.0.s8 %v123
    %v125 = vlaneseq
    %v126 = vshrl.u32 %v125, 7
    %v127 = vsub.s32 %v124, %v126
    %v128 = vrot.slane %v94, %v127
    %v130 = vunpack.c.l.s4 2004313702
    %v131 = vunpack.c.0.s8 %v130
    %v132 = vlaneseq
    %v133 = vshrl.u32 %v132, 7
    %v134 = vsub.s32 %v131, %v133
    %v135 = vrot.slane %v94, %v134
    %v137 = vunpack.c.l.s4 286326784
    %v138 = vunpack.c.0.s8 %v137
    %v139 = vlaneseq
    %v140 = vshrl.u32 %v139, 7
    %v141 = vsub.s32 %v138, %v140
    %v142 = vrot.slane %v95, %v141
    %v144 = vunpack.c.l.s4 858989090
    %v145 = vunpack.c.0.s8 %v144
    %v146 = vlaneseq
    %v147 = vshrl.u32 %v146, 7
    %v148 = vsub.s32 %v145, %v147
    %v149 = vrot.slane %v95, %v148
    %v151 = vunpack.c.l.s4 1431651396
    %v152 = vunpack.c.0.s8 %v151
    %v153 = vlaneseq
    %v154 = vshrl.u32 %v153, 7
    %v155 = vsub.s32 %v152, %v154
    %v156 = vrot.slane %v95, %v155
    %v158 = vunpack.c.l.s4 2004313702
    %v159 = vunpack.c.0.s8 %v158
    %v160 = vlaneseq
    %v161 = vshrl.u32 %v160, 7
    %v162 = vsub.s32 %v159, %v161
    %v163 = vrot.slane %v95, %v162
    %v172 = vmul.f32 %v98, %v114
    %v173 = vmul.f32 %v99, %v121
    %v174 = vmul.f32 %v100, %v128
    %v175 = vmul.f32 %v101, %v135
    %v176 = vmul.f32 %v102, %v142
    %v177 = vmul.f32 %v103, %v149
    %v178 = vmul.f32 %v104, %v156
    %v179 = vmul.f32 %v105, %v163
    %v180 = vadd.f32 %v89, 1e-07
    %v181 = vadd.f32 %v91, 1e-07
    %v182 = vlog2.pop %v180
    %v183 = vmul.f32 %v182, 0.6931472
    %v184 = vlog2.pop %v181
    %v185 = vmul.f32 %v184, 0.6931472
    %v189 = vunpack.c.l.s4 286326784
    %v190 = vunpack.c.0.s8 %v189
    %v191 = vlaneseq
    %v192 = vshrl.u32 %v191, 7
    %v193 = vsub.s32 %v190, %v192
    %v194 = vrot.slane %v183, %v193
    %v196 = vunpack.c.l.s4 858989090
    %v197 = vunpack.c.0.s8 %v196
    %v198 = vlaneseq
    %v199 = vshrl.u32 %v198, 7
    %v200 = vsub.s32 %v197, %v199
    %v201 = vrot.slane %v183, %v200
    %v203 = vunpack.c.l.s4 1431651396
    %v204 = vunpack.c.0.s8 %v203
    %v205 = vlaneseq
    %v206 = vshrl.u32 %v205, 7
    %v207 = vsub.s32 %v204, %v206
    %v208 = vrot.slane %v183, %v207
    %v210 = vunpack.c.l.s4 2004313702
    %v211 = vunpack.c.0.s8 %v210
    %v212 = vlaneseq
    %v213 = vshrl.u32 %v212, 7
    %v214 = vsub.s32 %v211, %v213
    %v215 = vrot.slane %v183, %v214
    %v217 = vunpack.c.l.s4 286326784
    %v218 = vunpack.c.0.s8 %v217
    %v219 = vlaneseq
    %v220 = vshrl.u32 %v219, 7
    %v221 = vsub.s32 %v218, %v220
    %v222 = vrot.slane %v185, %v221
    %v224 = vunpack.c.l.s4 858989090
    %v225 = vunpack.c.0.s8 %v224
    %v226 = vlaneseq
    %v227 = vshrl.u32 %v226, 7
    %v228 = vsub.s32 %v225, %v227
    %v229 = vrot.slane %v185, %v228
    %v231 = vunpack.c.l.s4 1431651396
    %v232 = vunpack.c.0.s8 %v231
    %v233 = vlaneseq
    %v234 = vshrl.u32 %v233, 7
    %v235 = vsub.s32 %v232, %v234
    %v236 = vrot.slane %v185, %v235
    %v238 = vunpack.c.l.s4 2004313702
    %v239 = vunpack.c.0.s8 %v238
    %v240 = vlaneseq
    %v241 = vshrl.u32 %v240, 7
    %v242 = vsub.s32 %v239, %v241
    %v243 = vrot.slane %v185, %v242
    %v252 = vmul.f32 %v172, %v194
    %v253 = vmul.f32 %v173, %v201
    %v254 = vmul.f32 %v174, %v208
    %v255 = vmul.f32 %v175, %v215
    %v256 = vmul.f32 %v176, %v222
    %v257 = vmul.f32 %v177, %v229
    %v258 = vmul.f32 %v178, %v236
    %v259 = vmul.f32 %v179, %v243
    %v260 = vsub.f32 1.0, %v72
    %v261 = vsub.f32 1.0, %v73
    %v262 = vsub.f32 1.0, %v74
    %v263 = vsub.f32 1.0, %v75
    %v264 = vsub.f32 1.0, %v76
    %v265 = vsub.f32 1.0, %v77
    %v266 = vsub.f32 1.0, %v78
    %v267 = vsub.f32 1.0, %v79
    %v268 = vmul.f32 %v260, 0.75
    %v269 = vmul.f32 %v261, 0.75
    %v270 = vmul.f32 %v262, 0.75
    %v271 = vmul.f32 %v263, 0.75
    %v272 = vmul.f32 %v264, 0.75
    %v273 = vmul.f32 %v265, 0.75
    %v274 = vmul.f32 %v266, 0.75
    %v275 = vmul.f32 %v267, 0.75
    %v279 = vunpack.c.l.s4 286326784
    %v280 = vunpack.c.0.s8 %v279
    %v281 = vlaneseq
    %v282 = vshrl.u32 %v281, 7
    %v283 = vsub.s32 %v280, %v282
    %v284 = vrot.slane %v96, %v283
    %v286 = vunpack.c.l.s4 858989090
    %v287 = vunpack.c.0.s8 %v286
    %v288 = vlaneseq
    %v289 = vshrl.u32 %v288, 7
    %v290 = vsub.s32 %v287, %v289
    %v291 = vrot.slane %v96, %v290
    %v293 = vunpack.c.l.s4 1431651396
    %v294 = vunpack.c.0.s8 %v293
    %v295 = vlaneseq
    %v296 = vshrl.u32 %v295, 7
    %v297 = vsub.s32 %v294, %v296
    %v298 = vrot.slane %v96, %v297
    %v300 = vunpack.c.l.s4 2004313702
    %v301 = vunpack.c.0.s8 %v300
    %v302 = vlaneseq
    %v303 = vshrl.u32 %v302, 7
    %v304 = vsub.s32 %v301, %v303
    %v305 = vrot.slane %v96, %v304
    %v307 = vunpack.c.l.s4 286326784
    %v308 = vunpack.c.0.s8 %v307
    %v309 = vlaneseq
    %v310 = vshrl.u32 %v309, 7
    %v311 = vsub.s32 %v308, %v310
    %v312 = vrot.slane %v97, %v311
    %v314 = vunpack.c.l.s4 858989090
    %v315 = vunpack.c.0.s8 %v314
    %v316 = vlaneseq
    %v317 = vshrl.u32 %v316, 7
    %v318 = vsub.s32 %v315, %v317
    %v319 = vrot.slane %v97, %v318
    %v321 = vunpack.c.l.s4 1431651396
    %v322 = vunpack.c.0.s8 %v321
    %v323 = vlaneseq
    %v324 = vshrl.u32 %v323, 7
    %v325 = vsub.s32 %v322, %v324
    %v326 = vrot.slane %v97, %v325
    %v328 = vunpack.c.l.s4 2004313702
    %v329 = vunpack.c.0.s8 %v328
    %v330 = vlaneseq
    %v331 = vshrl.u32 %v330, 7
    %v332 = vsub.s32 %v329, %v331
    %v333 = vrot.slane %v97, %v332
    %v342 = vmul.f32 %v268, %v284
    %v343 = vmul.f32 %v269, %v291
    %v344 = vmul.f32 %v270, %v298
    %v345 = vmul.f32 %v271, %v305
    %v346 = vmul.f32 %v272, %v312
    %v347 = vmul.f32 %v273, %v319
    %v348 = vmul.f32 %v274, %v326
    %v349 = vmul.f32 %v275, %v333
    %v350 = vadd.f32 %v92, 1e-07
    %v351 = vadd.f32 %v93, 1e-07
    %v352 = vlog2.pop %v350
    %v353 = vmul.f32 %v352, 0.6931472
    %v354 = vlog2.pop %v351
    %v355 = vmul.f32 %v354, 0.6931472
    %v359 = vunpack.c.l.s4 286326784
    %v360 = vunpack.c.0.s8 %v359
    %v361 = vlaneseq
    %v362 = vshrl.u32 %v361, 7
    %v363 = vsub.s32 %v360, %v362
    %v364 = vrot.slane %v353, %v363
    %v366 = vunpack.c.l.s4 858989090
    %v367 = vunpack.c.0.s8 %v366
    %v368 = vlaneseq
    %v369 = vshrl.u32 %v368, 7
    %v370 = vsub.s32 %v367, %v369
    %v371 = vrot.slane %v353, %v370
    %v373 = vunpack.c.l.s4 1431651396
    %v374 = vunpack.c.0.s8 %v373
    %v375 = vlaneseq
    %v376 = vshrl.u32 %v375, 7
    %v377 = vsub.s32 %v374, %v376
    %v378 = vrot.slane %v353, %v377
    %v380 = vunpack.c.l.s4 2004313702
    %v381 = vunpack.c.0.s8 %v380
    %v382 = vlaneseq
    %v383 = vshrl.u32 %v382, 7
    %v384 = vsub.s32 %v381, %v383
    %v385 = vrot.slane %v353, %v384
    %v387 = vunpack.c.l.s4 286326784
    %v388 = vunpack.c.0.s8 %v387
    %v389 = vlaneseq
    %v390 = vshrl.u32 %v389, 7
    %v391 = vsub.s32 %v388, %v390
    %v392 = vrot.slane %v355, %v391
    %v394 = vunpack.c.l.s4 858989090
    %v395 = vunpack.c.0.s8 %v394
    %v396 = vlaneseq
    %v397 = vshrl.u32 %v396, 7
    %v398 = vsub.s32 %v395, %v397
    %v399 = vrot.slane %v355, %v398
    %v401 = vunpack.c.l.s4 1431651396
    %v402 = vunpack.c.0.s8 %v401
    %v403 = vlaneseq
    %v404 = vshrl.u32 %v403, 7
    %v405 = vsub.s32 %v402, %v404
    %v406 = vrot.slane %v355, %v405
    %v408 = vunpack.c.l.s4 2004313702
    %v409 = vunpack.c.0.s8 %v408
    %v410 = vlaneseq
    %v411 = vshrl.u32 %v410, 7
    %v412 = vsub.s32 %v409, %v411
    %v413 = vrot.slane %v355, %v412
    %v422 = vmul.f32 %v342, %v364
    %v423 = vmul.f32 %v343, %v371
    %v424 = vmul.f32 %v344, %v378
    %v425 = vmul.f32 %v345, %v385
    %v426 = vmul.f32 %v346, %v392
    %v427 = vmul.f32 %v347, %v399
    %v428 = vmul.f32 %v348, %v406
    %v429 = vmul.f32 %v349, %v413
    %v430 = vsub.f32 %v252, %v422
    %v431 = vsub.f32 %v253, %v423
    %v432 = vsub.f32 %v254, %v424
    %v433 = vsub.f32 %v255, %v425
    %v434 = vsub.f32 %v256, %v426
    %v435 = vsub.f32 %v257, %v427
    %v436 = vsub.f32 %v258, %v428
    %v437 = vsub.f32 %v259, %v429
    %v438 = vld [vmem:[#allocation2] sm:$0xff]
    %v439 = vld [vmem:[#allocation2 + $0x8] sm:$0xff]
    %v449 = vunpack.c.l.s4 1966171168
    %v450 = vunpack.c.0.s8 %v449
    %v451 = vlaneseq
    %v452 = vshrl.u32 %v451, 7
    %v453 = vsub.s32 %v450, %v452
    %v454 = vrot.slane %v430, %v453
    %v456 = vunpack.c.l.s4 1966171168
    %v457 = vunpack.c.0.s8 %v456
    %v458 = vlaneseq
    %v459 = vshrl.u32 %v458, 7
    %v460 = vsub.s32 %v457, %v459
    %v461 = vrot.slane %v431, %v460
    %v463 = vunpack.c.l.s4 1966171168
    %v464 = vunpack.c.0.s8 %v463
    %v465 = vlaneseq
    %v466 = vshrl.u32 %v465, 7
    %v467 = vsub.s32 %v464, %v466
    %v468 = vrot.slane %v432, %v467
    %v470 = vunpack.c.l.s4 1966171168
    %v471 = vunpack.c.0.s8 %v470
    %v472 = vlaneseq
    %v473 = vshrl.u32 %v472, 7
    %v474 = vsub.s32 %v471, %v473
    %v475 = vrot.slane %v433, %v474
    %v476 = vcombine.low %v454, %v461
    %v477 = vcombine.low %v468, %v475
    %v479 = vunpack.c.l.s4 1966171168
    %v480 = vunpack.c.0.s8 %v479
    %v481 = vlaneseq
    %v482 = vshrl.u32 %v481, 7
    %v483 = vsub.s32 %v480, %v482
    %v484 = vrot.slane %v476, %v483
    %v486 = vunpack.c.l.s4 1966171168
    %v487 = vunpack.c.0.s8 %v486
    %v488 = vlaneseq
    %v489 = vshrl.u32 %v488, 7
    %v490 = vsub.s32 %v487, %v489
    %v491 = vrot.slane %v477, %v490
    %v492 = vcombine.low %v484, %v491
    %v494 = vunpack.c.l.s4 1966171168
    %v495 = vunpack.c.0.s8 %v494
    %v496 = vlaneseq
    %v497 = vshrl.u32 %v496, 7
    %v498 = vsub.s32 %v495, %v497
    %v499 = vrot.slane %v434, %v498
    %v501 = vunpack.c.l.s4 1966171168
    %v502 = vunpack.c.0.s8 %v501
    %v503 = vlaneseq
    %v504 = vshrl.u32 %v503, 7
    %v505 = vsub.s32 %v502, %v504
    %v506 = vrot.slane %v435, %v505
    %v508 = vunpack.c.l.s4 1966171168
    %v509 = vunpack.c.0.s8 %v508
    %v510 = vlaneseq
    %v511 = vshrl.u32 %v510, 7
    %v512 = vsub.s32 %v509, %v511
    %v513 = vrot.slane %v436, %v512
    %v515 = vunpack.c.l.s4 1966171168
    %v516 = vunpack.c.0.s8 %v515
    %v517 = vlaneseq
    %v518 = vshrl.u32 %v517, 7
    %v519 = vsub.s32 %v516, %v518
    %v520 = vrot.slane %v437, %v519
    %v521 = vcombine.low %v499, %v506
    %v522 = vcombine.low %v513, %v520
    %v524 = vunpack.c.l.s4 1966171168
    %v525 = vunpack.c.0.s8 %v524
    %v526 = vlaneseq
    %v527 = vshrl.u32 %v526, 7
    %v528 = vsub.s32 %v525, %v527
    %v529 = vrot.slane %v521, %v528
    %v531 = vunpack.c.l.s4 1966171168
    %v532 = vunpack.c.0.s8 %v531
    %v533 = vlaneseq
    %v534 = vshrl.u32 %v533, 7
    %v535 = vsub.s32 %v532, %v534
    %v536 = vrot.slane %v522, %v535
    %v537 = vcombine.low %v529, %v536
    %v540 = vadd.f32 %v438, %v492
    %v541 = vadd.f32 %v439, %v537
    %542 = vst [vmem:[#allocation2] sm:$0xff] %v540
    %543 = vst [vmem:[#allocation2 + $0x8] sm:$0xff] %v541
    // Predicated region
    $region22: #{tpu_custom_call.1} parent=1 // pred_check
      %p544 = pneg %p54
    $region23: #{tpu_custom_call.1} parent=1 // pred_check_branch
      %546 = sbr.rel (%p544) target = $region25
    $region24: #{tpu_custom_call.1} parent=1 // pred_region
      %v547 = vld [vmem:[#allocation2] sm:$0xff]
      %v548 = vld [vmem:[#allocation2 + $0x8] sm:$0xff]
      %v551 = vlaneseq
      %v552 = vshrl.u32 %v551, 7
      %v553 = vsub.s32 0, %v552
      %v554 = vrot.slane %v547, %v553
      %v555 = vlaneseq
      %v556 = vshrl.u32 %v555, 7
      %v557 = vsub.s32 1, %v556
      %v558 = vrot.slane %v547, %v557
      %v559 = vlaneseq
      %v560 = vshrl.u32 %v559, 7
      %v561 = vsub.s32 2, %v560
      %v562 = vrot.slane %v547, %v561
      %v563 = vlaneseq
      %v564 = vshrl.u32 %v563, 7
      %v565 = vsub.s32 3, %v564
      %v566 = vrot.slane %v547, %v565
      %v567 = vlaneseq
      %v568 = vshrl.u32 %v567, 7
      %v569 = vsub.s32 4, %v568
      %v570 = vrot.slane %v547, %v569
      %v571 = vlaneseq
      %v572 = vshrl.u32 %v571, 7
      %v573 = vsub.s32 5, %v572
      %v574 = vrot.slane %v547, %v573
      %v575 = vlaneseq
      %v576 = vshrl.u32 %v575, 7
      %v577 = vsub.s32 6, %v576
      %v578 = vrot.slane %v547, %v577
      %v579 = vlaneseq
      %v580 = vshrl.u32 %v579, 7
      %v581 = vsub.s32 7, %v580
      %v582 = vrot.slane %v547, %v581
      %v583 = vlaneseq
      %v584 = vshrl.u32 %v583, 7
      %v585 = vsub.s32 0, %v584
      %v586 = vrot.slane %v548, %v585
      %v587 = vlaneseq
      %v588 = vshrl.u32 %v587, 7
      %v589 = vsub.s32 1, %v588
      %v590 = vrot.slane %v548, %v589
      %v591 = vlaneseq
      %v592 = vshrl.u32 %v591, 7
      %v593 = vsub.s32 2, %v592
      %v594 = vrot.slane %v548, %v593
      %v595 = vlaneseq
      %v596 = vshrl.u32 %v595, 7
      %v597 = vsub.s32 3, %v596
      %v598 = vrot.slane %v548, %v597
      %v599 = vlaneseq
      %v600 = vshrl.u32 %v599, 7
      %v601 = vsub.s32 4, %v600
      %v602 = vrot.slane %v548, %v601
      %v603 = vlaneseq
      %v604 = vshrl.u32 %v603, 7
      %v605 = vsub.s32 5, %v604
      %v606 = vrot.slane %v548, %v605
      %v607 = vlaneseq
      %v608 = vshrl.u32 %v607, 7
      %v609 = vsub.s32 6, %v608
      %v610 = vrot.slane %v548, %v609
      %v611 = vlaneseq
      %v612 = vshrl.u32 %v611, 7
      %v613 = vsub.s32 7, %v612
      %v614 = vrot.slane %v548, %v613
      %vm631 = vcmask 1040384
      %v632 = vsel %vm631, %v554, 0.0
      %v633 = vsel %vm631, %v558, 0.0
      %v634 = vadd.f32 %v632, %v633
      %v635 = vsel %vm631, %v562, 0.0
      %v636 = vadd.f32 %v634, %v635
      %v637 = vsel %vm631, %v566, 0.0
      %v638 = vadd.f32 %v636, %v637
      %v639 = vsel %vm631, %v570, 0.0
      %v640 = vadd.f32 %v638, %v639
      %v641 = vsel %vm631, %v574, 0.0
      %v642 = vadd.f32 %v640, %v641
      %v643 = vsel %vm631, %v578, 0.0
      %v644 = vadd.f32 %v642, %v643
      %v645 = vsel %vm631, %v582, 0.0
      %v646 = vadd.f32 %v644, %v645
      %v647 = vsel %vm631, %v586, 0.0
      %v648 = vadd.f32 %v646, %v647
      %v649 = vsel %vm631, %v590, 0.0
      %v650 = vadd.f32 %v648, %v649
      %v651 = vsel %vm631, %v594, 0.0
      %v652 = vadd.f32 %v650, %v651
      %v653 = vsel %vm631, %v598, 0.0
      %v654 = vadd.f32 %v652, %v653
      %v655 = vsel %vm631, %v602, 0.0
      %v656 = vadd.f32 %v654, %v655
      %v657 = vsel %vm631, %v606, 0.0
      %v658 = vadd.f32 %v656, %v657
      %v659 = vsel %vm631, %v610, 0.0
      %v660 = vadd.f32 %v658, %v659
      %v661 = vsel %vm631, %v614, 0.0
      %v662 = vadd.f32 %v660, %v661
      %663 = vadd.xlane.f32.xlu0 %v662
      %v664 = vpop.xlane.xlu0 %663
      %v665 = vrot.slane %v664, 4
      %v666 = vadd.f32 %v664, %v665
      %v667 = vrot.slane %v666, 2
      %v668 = vadd.f32 %v666, %v667
      %v669 = vrot.slane %v668, 1
      %v670 = vadd.f32 %v668, %v669
      %s671 = vtos %v670
      %v672 = vstv %s671
      %v673 = vadd.f32 %v672, 0.0
      %vm674 = vcmask 0
      %675 = vst.msk [vmem:[#allocation8] sm:$0x1] %vm674, %v673
    $region25: #{tpu_custom_call.1} parent=1 // pred_fallthru
      _
    // Predicated region
    $region26: #{tpu_custom_call.1} parent=1 // pred_check
      _
    $region27: #{tpu_custom_call.1} parent=1 // pred_check_branch
      %677 = sbr.rel (0) target = $region29
    $region28: #{tpu_custom_call.1} parent=1 // pred_region
      %s679 = ssub.s32 16, 16
      %680 = vsyncadd [#allocation5], %s679
      %s682 = sshll.u32 [#allocation8], 4
      %s683 = int_to_ptr.vmem [resolvable:$true] %s682
      %685 = dma.vmem_to_hbm [thread:$0]  %s683, 16, %s2, [#allocation5]
    $region29: #{tpu_custom_call.1} parent=1 // pred_fallthru
      _
    // Predicated region
    $region30: #{tpu_custom_call.1} parent=1 // pred_check
      _
    $region31: #{tpu_custom_call.1} parent=1 // pred_check_branch
      %687 = sbr.rel (0) target = $region33
    $region32: #{tpu_custom_call.1} parent=1 // pred_region
      %688 = dma.done [#allocation5], 16
    $region33: #{tpu_custom_call.1} parent=1 // pred_fallthru
      _
    %689 = vsyncpa [#allocation4], 1
    %690 = vsyncpa [#allocation7], 1
    %691 = vsyncpa [#allocation5], 1

</llo_original>
